<compile_context>
chip_gen: v7x
topology: tpu7x:2x2x1
jax: 0.10.0
libtpu: 0.0.40
codegen_flags: <defaults>
</compile_context>

<pallas_src>
import functools

import jax
import jax.numpy as jnp
from jax.experimental import pallas as pl
from jax.experimental.pallas import tpu as pltpu

H1, H2, OUT = 32, 16, 1
_OUT_PAD = 8          # fc3 output rows padded 1 -> 8 sublanes (row 0 is the real one)
_LANE = 128           # batch tile must be a multiple of the lane width


def _cdiv(a, b):
    return -(-a // b)


def _round_up(n, m):
    return _cdiv(n, m) * m


def _choose_tile(batch, block_b, min_grid=2):
    """Lane-aligned batch tile: capped at block_b, keeps >= min_grid grid steps when
    there is enough work (v7x has 2 TensorCores), and minimizes padding bp - batch."""
    batch = max(int(batch), 1)
    max_tb = max(_round_up(block_b, _LANE), _LANE)
    nb = _cdiv(batch, max_tb)
    if batch >= min_grid * _LANE:
        nb = max(nb, min_grid)
    tb = _round_up(_cdiv(batch, nb), _LANE)
    bp = _round_up(batch, tb)
    return tb, bp


def _dqn_kernel(x_ref, w1_ref, b1_ref, w2_ref, b2_ref, w3_ref, b3_ref, out_ref,
                *, reward_type):
    """Feature-major: activations are (features, tb) with the batch along lanes.
    Weights/biases are VMEM-resident (constant index_map)."""
    xt = x_ref[...]                                             # (d_in, tb), bf16/f32

    # fc1 + ReLU : (H1, d_in) @ (d_in, tb) -> (H1, tb), f32 accumulate
    h1 = jnp.dot(w1_ref[...], xt, preferred_element_type=jnp.float32) + b1_ref[...]
    h1 = jnp.maximum(h1, 0.0)

    # fc2 + ReLU : (H2, H1) @ (H1, tb) -> (H2, tb)
    h2 = jnp.dot(w2_ref[...], h1.astype(w2_ref.dtype),
                 preferred_element_type=jnp.float32) + b2_ref[...]
    h2 = jnp.maximum(h2, 0.0)

    # fc3 + ReLU : (8, H2) @ (H2, tb) -> (8, tb); only row 0 is the real output.
    o = jnp.dot(w3_ref[...], h2.astype(w3_ref.dtype),
                preferred_element_type=jnp.float32) + b3_ref[...]
    o = jnp.maximum(o, 0.0)

    if reward_type == 'bin':
        o = jax.nn.sigmoid(o)

    # Lane-dense (1, tb) store — unmasked vst along the batch/lane axis.
    out_ref[...] = o[0:OUT, :].astype(out_ref.dtype)


def prepare_params(params, compute_dtype=jnp.bfloat16):
    """One-time prep (outside the kernel): cast weights to the MXU operand dtype,
    reshape biases to (features, 1) f32, pad fc3 to 8 output rows (zeros)."""
    w1 = params['w1'].astype(compute_dtype)                                  # (H1, d_in)
    w2 = params['w2'].astype(compute_dtype)                                  # (H2, H1)
    w3 = jnp.zeros((_OUT_PAD, H2), compute_dtype).at[:OUT].set(
        params['w3'].astype(compute_dtype))                                  # (8, H2)
    b1 = params['b1'].reshape(H1, 1).astype(jnp.float32)
    b2 = params['b2'].reshape(H2, 1).astype(jnp.float32)
    b3 = jnp.zeros((_OUT_PAD, 1), jnp.float32).at[:OUT].set(
        params['b3'].reshape(OUT, 1).astype(jnp.float32))
    return {'w1': w1, 'b1': b1, 'w2': w2, 'b2': b2, 'w3': w3, 'b3': b3}


def dqn_forward(x, prepared, reward_type='cont', *, block_b=4096):
    """x: (B, input_size). prepared: output of prepare_params(). Returns (B, 1) f32."""
    B, d_in = x.shape
    compute_dtype = prepared['w1'].dtype

    tb, bp = _choose_tile(B, block_b)
    nb = bp // tb

    # One fused XLA pass: cast to the MXU operand dtype + transpose to feature-major.
    x_t = x.astype(compute_dtype).T                              # (d_in, B)
    if bp != B:
        x_t = jnp.pad(x_t, ((0, 0), (0, bp - B)))

    w1, b1 = prepared['w1'], prepared['b1']
    w2, b2 = prepared['w2'], prepared['b2']
    w3, b3 = prepared['w3'], prepared['b3']

    kernel = functools.partial(_dqn_kernel, reward_type=reward_type)
    const = lambda i: (0, 0)                 # weights/biases: DMA'd once, VMEM-resident

    itemsize = jnp.dtype(compute_dtype).itemsize
    flops = 2 * bp * (d_in * H1 + H1 * H2 + H2 * OUT)
    transcendentals = bp * OUT if reward_type == 'bin' else 0
    bytes_accessed = int(
        d_in * bp * itemsize                                         # x_t read
        + (w1.size + w2.size + w3.size) * itemsize                   # weights (once)
        + (b1.size + b2.size + b3.size) * 4                          # biases (once)
        + bp * OUT * 4)                                              # output write

    out_padded = pl.pallas_call(
        kernel,
        out_shape=jax.ShapeDtypeStruct((OUT, bp), jnp.float32),
        grid_spec=pltpu.PrefetchScalarGridSpec(
            num_scalar_prefetch=0,
            grid=(nb,),
            in_specs=[
                pl.BlockSpec((d_in, tb), lambda i: (0, i)),          # x^T batch tile
                pl.BlockSpec(w1.shape, const),
                pl.BlockSpec(b1.shape, const),
                pl.BlockSpec(w2.shape, const),
                pl.BlockSpec(b2.shape, const),
                pl.BlockSpec(w3.shape, const),
                pl.BlockSpec(b3.shape, const),
            ],
            out_specs=pl.BlockSpec((OUT, tb), lambda i: (0, i)),     # lane-dense (1, tb)
        ),
        compiler_params=pltpu.CompilerParams(
            dimension_semantics=("parallel",)),
        cost_estimate=pl.CostEstimate(flops=flops,
                                      transcendentals=transcendentals,
                                      bytes_accessed=bytes_accessed),
    )(x_t, w1, b1, w2, b2, w3, b3)

    # Tiny (1, B) -> (B, 1) relayout + slice of the true batch.
    return out_padded[0, :B].reshape(B, OUT)


def init_dqn_params(key, input_size):
    """PyTorch nn.Linear-style params: W is (out_features, in_features), b is (out,),
    uniform +-1/sqrt(fan_in)."""
    dims = [(H1, input_size), (H2, H1), (OUT, H2)]
    params = {}
    for i, (fan_out, fan_in) in enumerate(dims, start=1):
        key, kw, kb = jax.random.split(key, 3)
        bound = 1.0 / (fan_in ** 0.5)
        params[f'w{i}'] = jax.random.uniform(
            kw, (fan_out, fan_in), jnp.float32, minval=-bound, maxval=bound)
        params[f'b{i}'] = jax.random.uniform(
            kb, (fan_out,), jnp.float32, minval=-bound, maxval=bound)
    return params


def dqn_reference(x, params, reward_type='cont'):
    # Matches the PyTorch module: ReLU on all three layers, optional sigmoid.
    h1 = jnp.maximum(x @ params['w1'].T + params['b1'], 0.0)
    h2 = jnp.maximum(h1 @ params['w2'].T + params['b2'], 0.0)
    o = jnp.maximum(h2 @ params['w3'].T + params['b3'], 0.0)
    if reward_type == 'bin':
        o = jax.nn.sigmoid(o)
    return o


if __name__ == "__main__":
    key = jax.random.PRNGKey(0)
    k_param, k_x = jax.random.split(key)

    batch = 200          # with block_b=128 below -> 2 grid steps (exercises the grid)
    input_size = 16

    params = init_dqn_params(k_param, input_size)
    prepared = prepare_params(params)
    x = jax.random.normal(k_x, (batch, input_size), jnp.float32)

    # 'cont' path (ReLU head, no sigmoid).
    out = jax.block_until_ready(dqn_forward(x, prepared, 'cont', block_b=128))
    ref = dqn_reference(x, params, 'cont')
    assert out.shape == (batch, OUT)
    # bf16 MXU operands vs f32 reference -> loose-ish tolerance.
    assert jnp.allclose(out, ref, atol=2e-2, rtol=2e-2), \
        f"max abs err {jnp.max(jnp.abs(out - ref))}"

    # 'bin' (sigmoid) branch.
    out_bin = jax.block_until_ready(dqn_forward(x, prepared, 'bin', block_b=128))
    ref_bin = dqn_reference(x, params, 'bin')
    assert jnp.allclose(out_bin, ref_bin, atol=2e-2, rtol=2e-2), \
        f"max abs err {jnp.max(jnp.abs(out_bin - ref_bin))}"

    print("KERNEL_OK")
</pallas_src>

<mosaic_0001>
module attributes {stable_mosaic.version = 11 : i64} {
  func.func @_dqn_kernel(%arg0: i32, %arg1: memref<16x128xbf16, #tpu.memory_space<vmem>>, %arg2: memref<32x16xbf16, #tpu.memory_space<vmem>>, %arg3: memref<32x1xf32, #tpu.memory_space<vmem>>, %arg4: memref<16x32xbf16, #tpu.memory_space<vmem>>, %arg5: memref<16x1xf32, #tpu.memory_space<vmem>>, %arg6: memref<8x16xbf16, #tpu.memory_space<vmem>>, %arg7: memref<8x1xf32, #tpu.memory_space<vmem>>, %arg8: memref<1x128xf32, #tpu.memory_space<vmem>>) attributes {dimension_semantics = [#tpu.dimension_semantics<parallel>], iteration_bounds = array<i64: 2>, scalar_prefetch = 0 : i64, scratch_operands = 0 : i64, tpu.core_type = #tpu.core_type<tc>, window_params = [{transform_indices = @transform_0, window_bounds = array<i64: 16, 128>}, {pipeline_mode = #tpu.pipeline_mode<synchronous>, transform_indices = @transform_1, window_bounds = array<i64: 32, 16>}, {pipeline_mode = #tpu.pipeline_mode<synchronous>, transform_indices = @transform_2, window_bounds = array<i64: 32, 1>}, {pipeline_mode = #tpu.pipeline_mode<synchronous>, transform_indices = @transform_3, window_bounds = array<i64: 16, 32>}, {pipeline_mode = #tpu.pipeline_mode<synchronous>, transform_indices = @transform_4, window_bounds = array<i64: 16, 1>}, {pipeline_mode = #tpu.pipeline_mode<synchronous>, transform_indices = @transform_5, window_bounds = array<i64: 8, 16>}, {pipeline_mode = #tpu.pipeline_mode<synchronous>, transform_indices = @transform_6, window_bounds = array<i64: 8, 1>}, {transform_indices = @transform_7, window_bounds = array<i64: 1, 128>}]} {
    %c0 = arith.constant 0 : index
    %c0_0 = arith.constant 0 : index
    %0 = vector.load %arg1[%c0, %c0_0] : memref<16x128xbf16, #tpu.memory_space<vmem>>, vector<16x128xbf16>
    %c0_1 = arith.constant 0 : index
    %c0_2 = arith.constant 0 : index
    %1 = vector.load %arg2[%c0_1, %c0_2] : memref<32x16xbf16, #tpu.memory_space<vmem>>, vector<32x16xbf16>
    %cst = arith.constant dense<0.000000e+00> : vector<32x128xf32>
    %2 = tpu.matmul %1, %0, %cst {dimension_numbers = #tpu.dot_dimension_numbers<[1], [0], [0], [1], [0, 0, 1, 1], [], []>} : vector<32x16xbf16>, vector<16x128xbf16>, vector<32x128xf32> -> vector<32x128xf32>
    %c0_3 = arith.constant 0 : index
    %c0_4 = arith.constant 0 : index
    %3 = vector.load %arg3[%c0_3, %c0_4] : memref<32x1xf32, #tpu.memory_space<vmem>>, vector<32x1xf32>
    %4 = vector.broadcast %3 : vector<32x1xf32> to vector<32x128xf32>
    %5 = arith.addf %2, %4 : vector<32x128xf32>
    %cst_5 = arith.constant 0.000000e+00 : f32
    %6 = vector.broadcast %cst_5 : f32 to vector<32x128xf32>
    %7 = arith.maximumf %5, %6 : vector<32x128xf32>
    %c0_6 = arith.constant 0 : index
    %c0_7 = arith.constant 0 : index
    %8 = vector.load %arg4[%c0_6, %c0_7] : memref<16x32xbf16, #tpu.memory_space<vmem>>, vector<16x32xbf16>
    %9 = arith.truncf %7 : vector<32x128xf32> to vector<32x128xbf16>
    %cst_8 = arith.constant dense<0.000000e+00> : vector<16x128xf32>
    %10 = tpu.matmul %8, %9, %cst_8 {dimension_numbers = #tpu.dot_dimension_numbers<[1], [0], [0], [1], [0, 0, 1, 1], [], []>} : vector<16x32xbf16>, vector<32x128xbf16>, vector<16x128xf32> -> vector<16x128xf32>
    %c0_9 = arith.constant 0 : index
    %c0_10 = arith.constant 0 : index
    %11 = vector.load %arg5[%c0_9, %c0_10] : memref<16x1xf32, #tpu.memory_space<vmem>>, vector<16x1xf32>
    %12 = vector.broadcast %11 : vector<16x1xf32> to vector<16x128xf32>
    %13 = arith.addf %10, %12 : vector<16x128xf32>
    %cst_11 = arith.constant 0.000000e+00 : f32
    %14 = vector.broadcast %cst_11 : f32 to vector<16x128xf32>
    %15 = arith.maximumf %13, %14 : vector<16x128xf32>
    %c0_12 = arith.constant 0 : index
    %c0_13 = arith.constant 0 : index
    %16 = vector.load %arg6[%c0_12, %c0_13] : memref<8x16xbf16, #tpu.memory_space<vmem>>, vector<8x16xbf16>
    %17 = arith.truncf %15 : vector<16x128xf32> to vector<16x128xbf16>
    %cst_14 = arith.constant dense<0.000000e+00> : vector<8x128xf32>
    %18 = tpu.matmul %16, %17, %cst_14 {dimension_numbers = #tpu.dot_dimension_numbers<[1], [0], [0], [1], [0, 0, 1, 1], [], []>} : vector<8x16xbf16>, vector<16x128xbf16>, vector<8x128xf32> -> vector<8x128xf32>
    %c0_15 = arith.constant 0 : index
    %c0_16 = arith.constant 0 : index
    %19 = vector.load %arg7[%c0_15, %c0_16] : memref<8x1xf32, #tpu.memory_space<vmem>>, vector<8x1xf32>
    %20 = vector.broadcast %19 : vector<8x1xf32> to vector<8x128xf32>
    %21 = arith.addf %18, %20 : vector<8x128xf32>
    %cst_17 = arith.constant 0.000000e+00 : f32
    %22 = vector.broadcast %cst_17 : f32 to vector<8x128xf32>
    %23 = arith.maximumf %21, %22 : vector<8x128xf32>
    %24 = vector.extract_strided_slice %23 {offsets = [0, 0], sizes = [1, 128], strides = [1, 1]} : vector<8x128xf32> to vector<1x128xf32>
    %c0_18 = arith.constant 0 : index
    %c0_19 = arith.constant 0 : index
    %25 = vector.load %arg8[%c0_18, %c0_19] : memref<1x128xf32, #tpu.memory_space<vmem>>, vector<1x128xf32>
    tpu.vector_store %arg8[%c0_18, %c0_19], %24 {strides = array<i32>} : memref<1x128xf32, #tpu.memory_space<vmem>>, vector<1x128xf32>,
    return
  }
  func.func @transform_0(%arg0: i32) -> (i32, i32) {
    %c0_i32 = arith.constant 0 : i32
    %c0_i32_0 = arith.constant 0 : i32
    return %c0_i32, %arg0 : i32, i32
  }
  func.func @transform_1(%arg0: i32) -> (i32, i32) {
    %c0_i32 = arith.constant 0 : i32
    %c0_i32_0 = arith.constant 0 : i32
    %c0_i32_1 = arith.constant 0 : i32
    return %c0_i32, %c0_i32_0 : i32, i32
  }
  func.func @transform_2(%arg0: i32) -> (i32, i32) {
    %c0_i32 = arith.constant 0 : i32
    %c0_i32_0 = arith.constant 0 : i32
    %c0_i32_1 = arith.constant 0 : i32
    return %c0_i32, %c0_i32_0 : i32, i32
  }
  func.func @transform_3(%arg0: i32) -> (i32, i32) {
    %c0_i32 = arith.constant 0 : i32
    %c0_i32_0 = arith.constant 0 : i32
    %c0_i32_1 = arith.constant 0 : i32
    return %c0_i32, %c0_i32_0 : i32, i32
  }
  func.func @transform_4(%arg0: i32) -> (i32, i32) {
    %c0_i32 = arith.constant 0 : i32
    %c0_i32_0 = arith.constant 0 : i32
    %c0_i32_1 = arith.constant 0 : i32
    return %c0_i32, %c0_i32_0 : i32, i32
  }
  func.func @transform_5(%arg0: i32) -> (i32, i32) {
    %c0_i32 = arith.constant 0 : i32
    %c0_i32_0 = arith.constant 0 : i32
    %c0_i32_1 = arith.constant 0 : i32
    return %c0_i32, %c0_i32_0 : i32, i32
  }
  func.func @transform_6(%arg0: i32) -> (i32, i32) {
    %c0_i32 = arith.constant 0 : i32
    %c0_i32_0 = arith.constant 0 : i32
    %c0_i32_1 = arith.constant 0 : i32
    return %c0_i32, %c0_i32_0 : i32, i32
  }
  func.func @transform_7(%arg0: i32) -> (i32, i32) {
    %c0_i32 = arith.constant 0 : i32
    %c0_i32_0 = arith.constant 0 : i32
    return %c0_i32, %arg0 : i32, i32
  }
}

</mosaic_0001>

<llo_original>
// kernel: tpu_custom_call.1
$region0: #{tpu_custom_call.1}
  #allocation0 [shape = 'u32[]', space=smem, size = 0x4, offset = 0x4, fixed_abs, tag = 'smem constant byte address 0x4 - core index']
  #allocation1 [shape = 'u32[144,128]{1,0:T(1,128)}', space=vmem, size = 0x12000, scoped, tag = 'internal scratch']
  %s0 = inlined_call_operand.vmem [shape: bf16[16,256], index: 0, kind: input, shape index: {}]
  %s1 = inlined_call_operand.vmem [shape: bf16[32,16], index: 1, kind: input, shape index: {}]
  %s2 = inlined_call_operand.vmem [shape: f32[32,1], index: 2, kind: input, shape index: {}]
  %s3 = inlined_call_operand.vmem [shape: bf16[16,32], index: 3, kind: input, shape index: {}]
  %s4 = inlined_call_operand.vmem [shape: f32[16,1], index: 4, kind: input, shape index: {}]
  %s5 = inlined_call_operand.vmem [shape: bf16[8,16], index: 5, kind: input, shape index: {}]
  %s6 = inlined_call_operand.vmem [shape: f32[8,1], index: 6, kind: input, shape index: {}]
  %s7 = inlined_call_operand.hbm [shape: f32[1,256], index: 7, kind: output, shape index: {}]
  %s8 = sld [smem:[#allocation0]]
  $region102: #{tpu_custom_call.1} parent=0
    _
  %s10 = ssub.s32 1, %s8
  %s11 = scalar_select 0, %s10, %s8
  $region1: #{tpu_custom_call.1} parent=0
    #allocation2 [shape = 'u8[8192]{0}', space=vmem, size = 0x2000, scoped, tag = 'input window, operand 0']
    #allocation3 [shape = 'u8[1024]{0}', space=vmem, size = 0x400, scoped, tag = 'output window, operand 0']
    #allocation4 [shape = 's32[2]{0}', space=sflag, size = 0x8, scoped, tag = 'scoped memory for tpu_custom_call.1']
    %12 = vsyncpa [#allocation4], 0
    %s13 = scalar_lea.sflag [#allocation4], 1
    %14 = vsyncpa %s13, 0
    loop: start=0, step=1, limit=4
    $region2: #{tpu_custom_call.1} parent=1 // loop_pre_header
      _
    $region3: #{tpu_custom_call.1} parent=1 // loop_header
      %s16 = sphi 0, %s20
      %p17 = scmp.ge.s32.totalorder %s16, 4
      %s26 = sphi 0, %s28
      %s29 = sphi 0, %s26
      %s30 = sphi 0, %s29
      %s46 = sphi 0, %s30
      %s50 = sphi 0, %s50
      %s52 = sphi 0, %s50
      %s53 = sphi 0, %s52
      %s67 = sphi 0, %s53
      %s71 = sphi 0, %s71
      %s73 = sphi 0, %s71
      %s74 = sphi 0, %s73
      %s88 = sphi 0, %s74
      %s92 = sphi 0, %s92
      %s94 = sphi 0, %s92
      %s95 = sphi 0, %s94
      %s109 = sphi 0, %s95
      %s113 = sphi 0, %s113
      %s115 = sphi 0, %s113
      %s116 = sphi 0, %s115
      %s130 = sphi 0, %s116
      %s134 = sphi 0, %s134
      %s136 = sphi 0, %s134
      %s137 = sphi 0, %s136
      %s151 = sphi 0, %s137
      %s155 = sphi 0, %s155
      %s157 = sphi 0, %s155
      %s158 = sphi 0, %s157
      %s172 = sphi 0, %s158
      %s178 = sphi 0, %s180
      %s181 = sphi 0, %s178
      %s182 = sphi 0, %s181
      %s198 = sphi 0, %s182
    $region4: #{tpu_custom_call.1} parent=1 // loop_header_branch
      %19 = sbr.rel (%p17) target = $region8
    $region5: #{tpu_custom_call.1} parent=1 // loop_body
      %s21 = ssub.s32 %s16, 1
      %s22 = ssub.s32 %s16, 2
      %s23 = sadd.s32 %s16, 1
      %s24 = ssub.s32 %s16, %s23
      %p25 = scmp.eq.s32.totalorder %s24, 0
      %s27 = sadd.s32 %s26, 1
      %s28 = scalar_select %p25, %s26, %s27
      %p31 = pneg %p25
      %p32 = scmp.eq.s32.totalorder %s16, 1
      %p33 = por %p31, %p32
      %p34 = scmp.ne.s32.totalorder %s26, %s29
      %p35 = scmp.eq.s32.totalorder %s16, 0
      %p36 = por %p34, %p35
      %p37 = scmp.ne.s32.totalorder %s26, %s29
      %p38 = scmp.eq.s32.totalorder %s21, 1
      %p39 = por %p37, %p38
      %p40 = scmp.ne.s32.totalorder %s29, %s30
      %p41 = scmp.eq.s32.totalorder %s21, 0
      %p42 = por %p40, %p41
      %p43 = scmp.ne.s32.totalorder %s29, %s30
      %p44 = scmp.eq.s32.totalorder %s22, 1
      %p45 = por %p43, %p44
      %p47 = scmp.ne.s32.totalorder %s30, %s46
      %p48 = scmp.eq.s32.totalorder %s22, 0
      %p49 = por %p47, %p48
      %s51 = sadd.s32 %s50, 1
      %p54 = scmp.eq.s32.totalorder %s16, 1
      %p55 = scmp.ne.s32.totalorder %s50, %s52
      %p56 = scmp.eq.s32.totalorder %s16, 0
      %p57 = por %p55, %p56
      %p58 = scmp.ne.s32.totalorder %s50, %s52
      %p59 = scmp.eq.s32.totalorder %s21, 1
      %p60 = por %p58, %p59
      %p61 = scmp.ne.s32.totalorder %s52, %s53
      %p62 = scmp.eq.s32.totalorder %s21, 0
      %p63 = por %p61, %p62
      %p64 = scmp.ne.s32.totalorder %s52, %s53
      %p65 = scmp.eq.s32.totalorder %s22, 1
      %p66 = por %p64, %p65
      %p68 = scmp.ne.s32.totalorder %s53, %s67
      %p69 = scmp.eq.s32.totalorder %s22, 0
      %p70 = por %p68, %p69
      %s72 = sadd.s32 %s71, 1
      %p75 = scmp.eq.s32.totalorder %s16, 1
      %p76 = scmp.ne.s32.totalorder %s71, %s73
      %p77 = scmp.eq.s32.totalorder %s16, 0
      %p78 = por %p76, %p77
      %p79 = scmp.ne.s32.totalorder %s71, %s73
      %p80 = scmp.eq.s32.totalorder %s21, 1
      %p81 = por %p79, %p80
      %p82 = scmp.ne.s32.totalorder %s73, %s74
      %p83 = scmp.eq.s32.totalorder %s21, 0
      %p84 = por %p82, %p83
      %p85 = scmp.ne.s32.totalorder %s73, %s74
      %p86 = scmp.eq.s32.totalorder %s22, 1
      %p87 = por %p85, %p86
      %p89 = scmp.ne.s32.totalorder %s74, %s88
      %p90 = scmp.eq.s32.totalorder %s22, 0
      %p91 = por %p89, %p90
      %s93 = sadd.s32 %s92, 1
      %p96 = scmp.eq.s32.totalorder %s16, 1
      %p97 = scmp.ne.s32.totalorder %s92, %s94
      %p98 = scmp.eq.s32.totalorder %s16, 0
      %p99 = por %p97, %p98
      %p100 = scmp.ne.s32.totalorder %s92, %s94
      %p101 = scmp.eq.s32.totalorder %s21, 1
      %p102 = por %p100, %p101
      %p103 = scmp.ne.s32.totalorder %s94, %s95
      %p104 = scmp.eq.s32.totalorder %s21, 0
      %p105 = por %p103, %p104
      %p106 = scmp.ne.s32.totalorder %s94, %s95
      %p107 = scmp.eq.s32.totalorder %s22, 1
      %p108 = por %p106, %p107
      %p110 = scmp.ne.s32.totalorder %s95, %s109
      %p111 = scmp.eq.s32.totalorder %s22, 0
      %p112 = por %p110, %p111
      %s114 = sadd.s32 %s113, 1
      %p117 = scmp.eq.s32.totalorder %s16, 1
      %p118 = scmp.ne.s32.totalorder %s113, %s115
      %p119 = scmp.eq.s32.totalorder %s16, 0
      %p120 = por %p118, %p119
      %p121 = scmp.ne.s32.totalorder %s113, %s115
      %p122 = scmp.eq.s32.totalorder %s21, 1
      %p123 = por %p121, %p122
      %p124 = scmp.ne.s32.totalorder %s115, %s116
      %p125 = scmp.eq.s32.totalorder %s21, 0
      %p126 = por %p124, %p125
      %p127 = scmp.ne.s32.totalorder %s115, %s116
      %p128 = scmp.eq.s32.totalorder %s22, 1
      %p129 = por %p127, %p128
      %p131 = scmp.ne.s32.totalorder %s116, %s130
      %p132 = scmp.eq.s32.totalorder %s22, 0
      %p133 = por %p131, %p132
      %s135 = sadd.s32 %s134, 1
      %p138 = scmp.eq.s32.totalorder %s16, 1
      %p139 = scmp.ne.s32.totalorder %s134, %s136
      %p140 = scmp.eq.s32.totalorder %s16, 0
      %p141 = por %p139, %p140
      %p142 = scmp.ne.s32.totalorder %s134, %s136
      %p143 = scmp.eq.s32.totalorder %s21, 1
      %p144 = por %p142, %p143
      %p145 = scmp.ne.s32.totalorder %s136, %s137
      %p146 = scmp.eq.s32.totalorder %s21, 0
      %p147 = por %p145, %p146
      %p148 = scmp.ne.s32.totalorder %s136, %s137
      %p149 = scmp.eq.s32.totalorder %s22, 1
      %p150 = por %p148, %p149
      %p152 = scmp.ne.s32.totalorder %s137, %s151
      %p153 = scmp.eq.s32.totalorder %s22, 0
      %p154 = por %p152, %p153
      %s156 = sadd.s32 %s155, 1
      %p159 = scmp.eq.s32.totalorder %s16, 1
      %p160 = scmp.ne.s32.totalorder %s155, %s157
      %p161 = scmp.eq.s32.totalorder %s16, 0
      %p162 = por %p160, %p161
      %p163 = scmp.ne.s32.totalorder %s155, %s157
      %p164 = scmp.eq.s32.totalorder %s21, 1
      %p165 = por %p163, %p164
      %p166 = scmp.ne.s32.totalorder %s157, %s158
      %p167 = scmp.eq.s32.totalorder %s21, 0
      %p168 = por %p166, %p167
      %p169 = scmp.ne.s32.totalorder %s157, %s158
      %p170 = scmp.eq.s32.totalorder %s22, 1
      %p171 = por %p169, %p170
      %p173 = scmp.ne.s32.totalorder %s158, %s172
      %p174 = scmp.eq.s32.totalorder %s22, 0
      %p175 = por %p173, %p174
      %s176 = ssub.s32 %s16, %s23
      %p177 = scmp.eq.s32.totalorder %s176, 0
      %s179 = sadd.s32 %s178, 1
      %s180 = scalar_select %p177, %s178, %s179
      %p183 = pneg %p177
      %p184 = scmp.eq.s32.totalorder %s16, 1
      %p185 = por %p183, %p184
      %p186 = scmp.ne.s32.totalorder %s178, %s181
      %p187 = scmp.eq.s32.totalorder %s16, 0
      %p188 = por %p186, %p187
      %p189 = scmp.ne.s32.totalorder %s178, %s181
      %p190 = scmp.eq.s32.totalorder %s21, 1
      %p191 = por %p189, %p190
      %p192 = scmp.ne.s32.totalorder %s181, %s182
      %p193 = scmp.eq.s32.totalorder %s21, 0
      %p194 = por %p192, %p193
      %p195 = scmp.ne.s32.totalorder %s181, %s182
      %p196 = scmp.eq.s32.totalorder %s22, 1
      %p197 = por %p195, %p196
      %p199 = scmp.ne.s32.totalorder %s182, %s198
      %p200 = scmp.eq.s32.totalorder %s22, 0
      %p201 = por %p199, %p200
      %p202 = scmp.le.s32.totalorder 1, %s16
      %p203 = scmp.lt.s32.totalorder %s16, 3
      %p204 = pnand %p202, %p203
      %p205 = pneg %p204
      // Predicated region
      $region9: #{tpu_custom_call.1} parent=5 // pred_check
        _
      $region10: #{tpu_custom_call.1} parent=5 // pred_check_branch
        %207 = sbr.rel (%p204) target = $region12
      $region11: #{tpu_custom_call.1} parent=5 // pred_region
        %s208 = ssub.s32 %s16, 1
        // Predicated region
        $region13: #{tpu_custom_call.1} parent=11 // pred_check
          %p209 = pneg %p63
        $region14: #{tpu_custom_call.1} parent=11 // pred_check_branch
          %211 = sbr.rel (%p209) target = $region16
        $region15: #{tpu_custom_call.1} parent=11 // pred_region
          _
        $region16: #{tpu_custom_call.1} parent=11 // pred_fallthru
          _
        // Predicated region
        $region17: #{tpu_custom_call.1} parent=11 // pred_check
          %p212 = pneg %p84
        $region18: #{tpu_custom_call.1} parent=11 // pred_check_branch
          %214 = sbr.rel (%p212) target = $region20
        $region19: #{tpu_custom_call.1} parent=11 // pred_region
          _
        $region20: #{tpu_custom_call.1} parent=11 // pred_fallthru
          _
        // Predicated region
        $region21: #{tpu_custom_call.1} parent=11 // pred_check
          %p215 = pneg %p105
        $region22: #{tpu_custom_call.1} parent=11 // pred_check_branch
          %217 = sbr.rel (%p215) target = $region24
        $region23: #{tpu_custom_call.1} parent=11 // pred_region
          _
        $region24: #{tpu_custom_call.1} parent=11 // pred_fallthru
          _
        // Predicated region
        $region25: #{tpu_custom_call.1} parent=11 // pred_check
          %p218 = pneg %p126
        $region26: #{tpu_custom_call.1} parent=11 // pred_check_branch
          %220 = sbr.rel (%p218) target = $region28
        $region27: #{tpu_custom_call.1} parent=11 // pred_region
          _
        $region28: #{tpu_custom_call.1} parent=11 // pred_fallthru
          _
        // Predicated region
        $region29: #{tpu_custom_call.1} parent=11 // pred_check
          %p221 = pneg %p147
        $region30: #{tpu_custom_call.1} parent=11 // pred_check_branch
          %223 = sbr.rel (%p221) target = $region32
        $region31: #{tpu_custom_call.1} parent=11 // pred_region
          _
        $region32: #{tpu_custom_call.1} parent=11 // pred_fallthru
          _
        // Predicated region
        $region33: #{tpu_custom_call.1} parent=11 // pred_check
          %p224 = pneg %p168
        $region34: #{tpu_custom_call.1} parent=11 // pred_check_branch
          %226 = sbr.rel (%p224) target = $region36
        $region35: #{tpu_custom_call.1} parent=11 // pred_region
          _
        $region36: #{tpu_custom_call.1} parent=11 // pred_fallthru
          _
      $region12: #{tpu_custom_call.1} parent=5 // pred_fallthru
        _
      %p227 = scmp.lt.s32.totalorder %s16, 2
      // Predicated region
      $region37: #{tpu_custom_call.1} parent=5 // pred_check
        %p228 = pneg %p227
      $region38: #{tpu_custom_call.1} parent=5 // pred_check_branch
        %230 = sbr.rel (%p228) target = $region40
      $region39: #{tpu_custom_call.1} parent=5 // pred_region
        // Predicated region
        $region41: #{tpu_custom_call.1} parent=39 // pred_check
          %p231 = pneg %p36
        $region42: #{tpu_custom_call.1} parent=39 // pred_check_branch
          %233 = sbr.rel (%p231) target = $region44
        $region43: #{tpu_custom_call.1} parent=39 // pred_region
          %s234 = sand.u32 %s26, 1
          %s235 = sand.u32 %s26, 1
          %s236 = smul.addr %s235, 8
          %s237 = scalar_lea.vmem [#allocation2], %s236
          %s238 = smul.addr %s16, 4
          %s239 = scalar_lea.vmem %s0, %s238
          // Predicated region
          $region45: #{tpu_custom_call.1} parent=43 // pred_check
            _
          $region46: #{tpu_custom_call.1} parent=43 // pred_check_branch
            %241 = sbr.rel (0) target = $region48
          $region47: #{tpu_custom_call.1} parent=43 // pred_region
            // Predicated region
            $region49: #{tpu_custom_call.1} parent=47 // pred_check
              _
            $region50: #{tpu_custom_call.1} parent=47 // pred_check_branch
              %243 = sbr.rel target = $region52
            $region51: #{tpu_custom_call.1} parent=47 // pred_region
              // Predicated region
              $region64: #{tpu_custom_call.1} parent=51 // pred_check
                _
              $region65: #{tpu_custom_call.1} parent=51 // pred_check_branch
                %260 = sbr.rel (0) target = $region67
              $region66: #{tpu_custom_call.1} parent=51 // pred_region
                loop: start=0, step=1, limit=1
                $region68: #{tpu_custom_call.1} parent=66 // loop_pre_header
                  _
                $region69: #{tpu_custom_call.1} parent=66 // loop_header
                  %s262 = sphi 0, %s266
                  %p263 = scmp.ge.s32.totalorder %s262, 1
                  %s267 = sphi %s239, %s239
                  %s268 = sphi %s237, %s237
                $region70: #{tpu_custom_call.1} parent=66 // loop_header_branch
                  %265 = sbr.rel (%p263) target = $region74
                $region71: #{tpu_custom_call.1} parent=66 // loop_body
                  _
                $region72: #{tpu_custom_call.1} parent=66 // loop_footer
                  %s266 = sadd.s32 1, %s262
                $region73: #{tpu_custom_call.1} parent=66 // loop_footer_branch
                  %261 = sbr.rel target = $region69
                $region74: #{tpu_custom_call.1} parent=66 // loop_exit
                  _
                loop: start=0, step=1, limit=1
                $region75: #{tpu_custom_call.1} parent=66 // loop_pre_header
                  _
                $region76: #{tpu_custom_call.1} parent=66 // loop_header
                  %s271 = sphi 0, %s275
                  %p272 = scmp.ge.s32.totalorder %s271, 1
                  %s276 = sphi %s239, %s239
                  %s277 = sphi %s237, %s237
                $region77: #{tpu_custom_call.1} parent=66 // loop_header_branch
                  %274 = sbr.rel (%p272) target = $region81
                $region78: #{tpu_custom_call.1} parent=66 // loop_body
                  %v278 = vld [vmem:[%s276] sm:$0xf]
                  %279 = vst [vmem:[%s277] sm:$0xf] %v278
                  %v280 = vld [vmem:[%s276 + $0x8] sm:$0xf]
                  %281 = vst [vmem:[%s277 + $0x4] sm:$0xf] %v280
                $region79: #{tpu_custom_call.1} parent=66 // loop_footer
                  %s275 = sadd.s32 1, %s271
                $region80: #{tpu_custom_call.1} parent=66 // loop_footer_branch
                  %270 = sbr.rel target = $region76
                $region81: #{tpu_custom_call.1} parent=66 // loop_exit
                  _
              $region67: #{tpu_custom_call.1} parent=51 // pred_fallthru
                _
            $region52: #{tpu_custom_call.1} parent=47 // pred_fallthru
              _
            // Predicated region
            $region53: #{tpu_custom_call.1} parent=47 // pred_check
              _
            $region54: #{tpu_custom_call.1} parent=47 // pred_check_branch
              %245 = sbr.rel (0) target = $region56
            $region55: #{tpu_custom_call.1} parent=47 // pred_region
              loop: start=0, step=1, limit=1
              $region57: #{tpu_custom_call.1} parent=55 // loop_pre_header
                _
              $region58: #{tpu_custom_call.1} parent=55 // loop_header
                %s248 = sphi 0, %s252
                %p249 = scmp.ge.s32.totalorder %s248, 1
                %s253 = sphi %s239, %s239
                %s254 = sphi %s237, %s237
              $region59: #{tpu_custom_call.1} parent=55 // loop_header_branch
                %251 = sbr.rel (%p249) target = $region63
              $region60: #{tpu_custom_call.1} parent=55 // loop_body
                %v255 = vld [vmem:[%s253] sm:$0xf]
                %256 = vst [vmem:[%s254] sm:$0xf] %v255
                %v257 = vld [vmem:[%s253 + $0x8] sm:$0xf]
                %258 = vst [vmem:[%s254 + $0x4] sm:$0xf] %v257
              $region61: #{tpu_custom_call.1} parent=55 // loop_footer
                %s252 = sadd.s32 1, %s248
              $region62: #{tpu_custom_call.1} parent=55 // loop_footer_branch
                %247 = sbr.rel target = $region58
              $region63: #{tpu_custom_call.1} parent=55 // loop_exit
                _
            $region56: #{tpu_custom_call.1} parent=47 // pred_fallthru
              _
          $region48: #{tpu_custom_call.1} parent=43 // pred_fallthru
            _
          %282 = vnop
        $region44: #{tpu_custom_call.1} parent=39 // pred_fallthru
          _
      $region40: #{tpu_custom_call.1} parent=5 // pred_fallthru
        _
      %p283 = scmp.le.s32.totalorder 1, %s16
      %p284 = scmp.lt.s32.totalorder %s16, 3
      %p285 = pnand %p283, %p284
      %p286 = pneg %p285
      // Predicated region
      $region82: #{tpu_custom_call.1} parent=5 // pred_check
        _
      $region83: #{tpu_custom_call.1} parent=5 // pred_check_branch
        %288 = sbr.rel (%p285) target = $region85
      $region84: #{tpu_custom_call.1} parent=5 // pred_region
        %s289 = ssub.s32 %s16, 1
        %s290 = sand.u32 %s29, 1
        %s291 = sand.u32 %s29, 1
        %s292 = smul.addr %s291, 8
        %s293 = scalar_lea.vmem [#allocation2], %s292
        // Predicated region
        $region86: #{tpu_custom_call.1} parent=84 // pred_check
          %p294 = pneg %p42
        $region87: #{tpu_custom_call.1} parent=84 // pred_check_branch
          %296 = sbr.rel (%p294) target = $region89
        $region88: #{tpu_custom_call.1} parent=84 // pred_region
          _
        $region89: #{tpu_custom_call.1} parent=84 // pred_fallthru
          _
        %s297 = sand.u32 %s29, 1
        %s298 = sand.u32 %s29, 1
        %s299 = smul.addr %s298, 8
        %s300 = scalar_lea.vmem [#allocation2], %s299
        %p301 = pneg %p42
        %p302 = pneg %p39
        %p303 = pneg %p63
        %p304 = pneg %p60
        %p305 = pneg %p84
        %p306 = pneg %p81
        %p307 = pneg %p105
        %p308 = pneg %p102
        %p309 = pneg %p126
        %p310 = pneg %p123
        %p311 = pneg %p147
        %p312 = pneg %p144
        %p313 = pneg %p168
        %p314 = pneg %p165
        %p315 = pneg %p194
        %p316 = pneg %p191
        %s317 = sand.u32 %s181, 1
        %s318 = scalar_lea.sflag [#allocation4], %s317
        %s319 = sand.u32 %s181, 1
        %s320 = scalar_lea.vmem [#allocation3], %s319
        %v322 = vld [vmem:[%s293] sm:$0xf]
        %v323 = vld [vmem:[%s293 + $0x4] sm:$0xf]
        %v324 = vld [vmem:[%s1] sm:$0xf]
        %v325 = vld [vmem:[%s1 + $0x4] sm:$0xf]
        %v326 = vld [vmem:[%s1 + $0x8] sm:$0xf]
        %v327 = vld [vmem:[%s1 + $0xc] sm:$0xf]
        %v328 = vld [vmem:[%s2] sm:$0xff]
        %v329 = vld [vmem:[%s2 + $0x8] sm:$0xff]
        %v330 = vld [vmem:[%s2 + $0x10] sm:$0xff]
        %v331 = vld [vmem:[%s2 + $0x18] sm:$0xff]
        %333 = vset.pattern.permute.xlu0 0
        %334 = vperm.xlu0 %333, %v328
        %v335 = vpop.permute.xlu0 %334
        %338 = vset.pattern.permute.xlu0 0
        %339 = vperm.xlu0 %338, %v329
        %v340 = vpop.permute.xlu0 %339
        %343 = vset.pattern.permute.xlu0 0
        %344 = vperm.xlu0 %343, %v330
        %v345 = vpop.permute.xlu0 %344
        %348 = vset.pattern.permute.xlu0 0
        %349 = vperm.xlu0 %348, %v331
        %v350 = vpop.permute.xlu0 %349
        %v356 = vunpack.c.l.b16 %v324
        %v357 = vunpack.c.l.b16 %v325
        %v358 = vunpack.c.l.b16 %v326
        %v359 = vunpack.c.l.b16 %v327
        %v360 = vpack.c.b16 %v357, %v356
        %v361 = vpack.c.b16 %v359, %v358
        %v364 = vunpack.c.l.b16 %v322
        %v365 = vunpack.c.l.b16 %v323
        %v366 = vpack.c.b16 %v365, %v364
        %vm368 = vcmask 130048
        %v370 = vsel %vm368, %v360, 0
        %v373 = vsel %vm368, %v361, 0
        %375 = vmatprep.subr.bf16.mxu0 0
        %376 = vmatpush1.bf16.msra.mxu0 %v366
        %377 = vmatprep.subr.bf16.mxu0 0
        %378 = vmatpush1.bf16.msra.mxu0 0
        %379 = vmatprep.subr.bf16.mxu0 0
        %380 = vmatpush1.bf16.msra.mxu0 0
        %381 = vmatprep.subr.bf16.mxu0 0
        %382 = vmatpush1.bf16.msra.mxu0 0
        %383 = vmatprep.subr.bf16.mxu0 0
        %384 = vmatpush1.bf16.msra.mxu0 0
        %385 = vmatprep.subr.bf16.mxu0 0
        %386 = vmatpush1.bf16.msra.mxu0 0
        %387 = vmatprep.subr.bf16.mxu0 0
        %388 = vmatpush1.bf16.msra.mxu0 0
        %389 = vmatprep.subr.bf16.mxu0 0
        %390 = vmatpush1.bf16.msra.mxu0 0
        %391 = vmatprep.subr.bf16.mxu0 0
        %392 = vmatpush1.bf16.msra.mxu0 0
        %393 = vmatprep.subr.bf16.mxu0 0
        %394 = vmatpush1.bf16.msra.mxu0 0
        %395 = vmatprep.subr.bf16.mxu0 0
        %396 = vmatpush1.bf16.msra.mxu0 0
        %397 = vmatprep.subr.bf16.mxu0 0
        %398 = vmatpush1.bf16.msra.mxu0 0
        %399 = vmatprep.subr.bf16.mxu0 0
        %400 = vmatpush1.bf16.msra.mxu0 0
        %401 = vmatprep.subr.bf16.mxu0 0
        %402 = vmatpush1.bf16.msra.mxu0 0
        %403 = vmatprep.subr.bf16.mxu0 0
        %404 = vmatpush1.bf16.msra.mxu0 0
        %405 = vmatprep.subr.bf16.mxu0 0
        %406 = vmatpush1.bf16.msra.mxu0 0
        %407 = vmatprep.mubr.bf16.mxu0 0
        %408 = vmatmul.mubr.bf16.gmra.mrb[0].mxu0 %v370
        %v409 = vpop.f32.mrb[0].mxu0
        %v410 = vadd.f32 %v335, %v409
        %v411 = vpop.f32.mrb[0].mxu0
        %v412 = vpop.f32.mrb[0].mxu0
        %v413 = vadd.f32 %v340, %v412
        %v414 = vpop.f32.mrb[0].mxu0
        %415 = vmatprep.mubr.bf16.mxu0 0
        %416 = vmatmul.mubr.bf16.gmra.mrb[0].mxu0 %v373
        %v417 = vpop.f32.mrb[0].mxu0
        %v418 = vadd.f32 %v345, %v417
        %v419 = vpop.f32.mrb[0].mxu0
        %v420 = vpop.f32.mrb[0].mxu0
        %v421 = vadd.f32 %v350, %v420
        %v422 = vpop.f32.mrb[0].mxu0
        %423 = vdwg.mxu0
        %v424 = vmax.f32 %v410, 0.0
        %v425 = vmax.f32 %v413, 0.0
        %v426 = vmax.f32 %v418, 0.0
        %v427 = vmax.f32 %v421, 0.0
        %v428 = vld [vmem:[%s3] sm:$0xf]
        %v429 = vld [vmem:[%s3 + $0x4] sm:$0xf]
        %v430 = vpack.c.bf16 %v425, %v424
        %v431 = vpack.c.bf16 %v427, %v426
        %v432 = vld [vmem:[%s4] sm:$0xff]
        %v433 = vld [vmem:[%s4 + $0x8] sm:$0xff]
        %435 = vset.pattern.permute.xlu0 0
        %436 = vperm.xlu0 %435, %v432
        %v437 = vpop.permute.xlu0 %436
        %440 = vset.pattern.permute.xlu0 0
        %441 = vperm.xlu0 %440, %v433
        %v442 = vpop.permute.xlu0 %441
        %v446 = vunpack.c.l.b16 %v428
        %v447 = vunpack.c.l.b16 %v429
        %v448 = vpack.c.b16 %v447, %v446
        %vm449 = vcmask 261120
        %v451 = vsel %vm449, %v448, 0
        %453 = vmatprep.subr.bf16.mxu0 0
        %454 = vmatpush1.bf16.msra.mxu0 %v430
        %455 = vmatprep.subr.bf16.mxu0 0
        %456 = vmatpush1.bf16.msra.mxu0 %v431
        %457 = vmatprep.subr.bf16.mxu0 0
        %458 = vmatpush1.bf16.msra.mxu0 0
        %459 = vmatprep.subr.bf16.mxu0 0
        %460 = vmatpush1.bf16.msra.mxu0 0
        %461 = vmatprep.subr.bf16.mxu0 0
        %462 = vmatpush1.bf16.msra.mxu0 0
        %463 = vmatprep.subr.bf16.mxu0 0
        %464 = vmatpush1.bf16.msra.mxu0 0
        %465 = vmatprep.subr.bf16.mxu0 0
        %466 = vmatpush1.bf16.msra.mxu0 0
        %467 = vmatprep.subr.bf16.mxu0 0
        %468 = vmatpush1.bf16.msra.mxu0 0
        %469 = vmatprep.subr.bf16.mxu0 0
        %470 = vmatpush1.bf16.msra.mxu0 0
        %471 = vmatprep.subr.bf16.mxu0 0
        %472 = vmatpush1.bf16.msra.mxu0 0
        %473 = vmatprep.subr.bf16.mxu0 0
        %474 = vmatpush1.bf16.msra.mxu0 0
        %475 = vmatprep.subr.bf16.mxu0 0
        %476 = vmatpush1.bf16.msra.mxu0 0
        %477 = vmatprep.subr.bf16.mxu0 0
        %478 = vmatpush1.bf16.msra.mxu0 0
        %479 = vmatprep.subr.bf16.mxu0 0
        %480 = vmatpush1.bf16.msra.mxu0 0
        %481 = vmatprep.subr.bf16.mxu0 0
        %482 = vmatpush1.bf16.msra.mxu0 0
        %483 = vmatprep.subr.bf16.mxu0 0
        %484 = vmatpush1.bf16.msra.mxu0 0
        %485 = vmatprep.mubr.bf16.mxu0 0
        %486 = vmatmul.mubr.bf16.gmra.mrb[0].mxu0 %v451
        %v487 = vpop.f32.mrb[0].mxu0
        %v488 = vadd.f32 %v437, %v487
        %v489 = vpop.f32.mrb[0].mxu0
        %v490 = vpop.f32.mrb[0].mxu0
        %v491 = vadd.f32 %v442, %v490
        %v492 = vpop.f32.mrb[0].mxu0
        %493 = vdwg.mxu0
        %v494 = vmax.f32 %v488, 0.0
        %v495 = vmax.f32 %v491, 0.0
        %v496 = vld [vmem:[%s5] sm:$0xf]
        %v497 = vpack.c.bf16 %v495, %v494
        %v498 = vld [vmem:[%s6] sm:$0xff]
        %500 = vset.pattern.permute.xlu0 0
        %501 = vperm.xlu0 %500, %v498
        %v502 = vpop.permute.xlu0 %501
        %v505 = vsel %vm368, %v496, 0
        %507 = vmatprep.subr.bf16.mxu0 0
        %508 = vmatpush1.bf16.msra.mxu0 %v497
        %509 = vmatprep.subr.bf16.mxu0 0
        %510 = vmatpush1.bf16.msra.mxu0 0
        %511 = vmatprep.subr.bf16.mxu0 0
        %512 = vmatpush1.bf16.msra.mxu0 0
        %513 = vmatprep.subr.bf16.mxu0 0
        %514 = vmatpush1.bf16.msra.mxu0 0
        %515 = vmatprep.subr.bf16.mxu0 0
        %516 = vmatpush1.bf16.msra.mxu0 0
        %517 = vmatprep.subr.bf16.mxu0 0
        %518 = vmatpush1.bf16.msra.mxu0 0
        %519 = vmatprep.subr.bf16.mxu0 0
        %520 = vmatpush1.bf16.msra.mxu0 0
        %521 = vmatprep.subr.bf16.mxu0 0
        %522 = vmatpush1.bf16.msra.mxu0 0
        %523 = vmatprep.subr.bf16.mxu0 0
        %524 = vmatpush1.bf16.msra.mxu0 0
        %525 = vmatprep.subr.bf16.mxu0 0
        %526 = vmatpush1.bf16.msra.mxu0 0
        %527 = vmatprep.subr.bf16.mxu0 0
        %528 = vmatpush1.bf16.msra.mxu0 0
        %529 = vmatprep.subr.bf16.mxu0 0
        %530 = vmatpush1.bf16.msra.mxu0 0
        %531 = vmatprep.subr.bf16.mxu0 0
        %532 = vmatpush1.bf16.msra.mxu0 0
        %533 = vmatprep.subr.bf16.mxu0 0
        %534 = vmatpush1.bf16.msra.mxu0 0
        %535 = vmatprep.subr.bf16.mxu0 0
        %536 = vmatpush1.bf16.msra.mxu0 0
        %537 = vmatprep.subr.bf16.mxu0 0
        %538 = vmatpush1.bf16.msra.mxu0 0
        %539 = vmatprep.mubr.bf16.mxu0 0
        %540 = vmatmul.mubr.bf16.gmra.mrb[0].mxu0 %v505
        %v541 = vpop.f32.mrb[0].mxu0
        %v542 = vadd.f32 %v502, %v541
        %v543 = vpop.f32.mrb[0].mxu0
        %v544 = vpop.f32.mrb[0].mxu0
        %v545 = vpop.f32.mrb[0].mxu0
        %546 = vdwg.mxu0
        %v547 = vmax.f32 %v542, 0.0
        %548 = vst [vmem:[%s320] sm:$0x1] %v547
        %s549 = sand.u32 %s181, 1
        %s550 = scalar_lea.sflag [#allocation4], %s549
        %s551 = sand.u32 %s181, 1
        %s552 = scalar_lea.vmem [#allocation3], %s551
        // Predicated region
        $region90: #{tpu_custom_call.1} parent=84 // pred_check
          %p553 = pneg %p191
        $region91: #{tpu_custom_call.1} parent=84 // pred_check_branch
          %555 = sbr.rel (%p553) target = $region93
        $region92: #{tpu_custom_call.1} parent=84 // pred_region
          %s557 = ssub.s32 16, 16
          %558 = vsyncadd %s550, %s557
          %s559 = smul.addr %s21, 16
          %s560 = scalar_lea.hbm %s7, %s559
          %s562 = sshll.u32 %s552, 4
          %s563 = int_to_ptr.vmem [resolvable:$true] %s562
          %565 = dma.vmem_to_hbm [thread:$0]  %s563, 16, %s560, %s550
        $region93: #{tpu_custom_call.1} parent=84 // pred_fallthru
          _
      $region85: #{tpu_custom_call.1} parent=5 // pred_fallthru
        _
      %p566 = scmp.le.s32.totalorder 2, %s16
      // Predicated region
      $region94: #{tpu_custom_call.1} parent=5 // pred_check
        %p567 = pneg %p566
      $region95: #{tpu_custom_call.1} parent=5 // pred_check_branch
        %569 = sbr.rel (%p567) target = $region97
      $region96: #{tpu_custom_call.1} parent=5 // pred_region
        %s570 = ssub.s32 %s16, 2
        // Predicated region
        $region98: #{tpu_custom_call.1} parent=96 // pred_check
          %p571 = pneg %p197
        $region99: #{tpu_custom_call.1} parent=96 // pred_check_branch
          %573 = sbr.rel (%p571) target = $region101
        $region100: #{tpu_custom_call.1} parent=96 // pred_region
          %s574 = sand.u32 %s182, 1
          %s575 = scalar_lea.sflag [#allocation4], %s574
          %s576 = sand.u32 %s182, 1
          %s577 = scalar_lea.vmem [#allocation3], %s576
          %578 = dma.done %s575, 16
        $region101: #{tpu_custom_call.1} parent=96 // pred_fallthru
          _
      $region97: #{tpu_custom_call.1} parent=5 // pred_fallthru
        _
    $region6: #{tpu_custom_call.1} parent=1 // loop_footer
      %s20 = sadd.s32 1, %s16
    $region7: #{tpu_custom_call.1} parent=1 // loop_footer_branch
      %15 = sbr.rel target = $region3
    $region8: #{tpu_custom_call.1} parent=1 // loop_exit
      _
    %579 = vsyncpa [#allocation4], 1
    %s580 = scalar_lea.sflag [#allocation4], 1
    %581 = vsyncpa %s580, 1

</llo_original>
